<compile_context>
chip_gen: v7x
topology: tpu7x:2x2x1
jax: 0.10.0
libtpu: 0.0.40
codegen_flags: <defaults>
</compile_context>

<pallas_src>
import numpy as np
import jax
import jax.numpy as jnp
from jax.experimental import pallas as pl
from jax.experimental.pallas import tpu as pltpu


def _build_patch_indices():
    """Static im2col gather indices.

    Row p = (pi*3 + pj)*4 + a*2 + b  (pooled cell k = pi*3+pj, member (a,b)),
    i.e. the 4 conv positions feeding one pool cell are contiguous rows.
    Column t = di*4 + dj (conv tap); column 16 indexes a constant 1.0 (bias).
    Out-of-bounds taps (from padding=1) index a constant 0.0.
    """
    idx = np.zeros((24, 17), dtype=np.int32)
    for k in range(6):                      # pooled cell, k = pi*3 + pj
        pi, pj = k // 3, k % 3
        for a in range(2):
            for b in range(2):
                p = k * 4 + a * 2 + b       # patch row
                oi, oj = 2 * pi + a, 2 * pj + b   # conv output position
                for di in range(4):
                    for dj in range(4):
                        r, c = oi + di - 1, oj + dj - 1   # padding = 1
                        t = di * 4 + dj
                        idx[p, t] = r * 7 + c if (0 <= r < 6 and 0 <= c < 7) else 42
                idx[p, 16] = 43             # constant-one column -> conv bias
    return idx


_PATCH_IDX = jnp.asarray(_build_patch_indices())          # (24, 17) int32
_AUG = jnp.asarray([0.0, 1.0], dtype=jnp.float32)          # [zero, one] sentinels


def connect4_kernel(patches_ref, wb_ref, lin_ref, out_ref):
    # patches_ref: VMEM (24, 17) f32 -- im2col rows (4 per pool cell), col 16 = 1.0
    # wb_ref     : VMEM (17, 42) f32 -- rows 0..15 conv taps (di*4+dj), row 16 = conv bias
    # lin_ref    : SMEM (1, 8)   f32 -- [wlin[0..5], blin, 0]
    # out_ref    : VMEM (1, 42)  f32 -- sigmoid(linear(pooled)) per conv channel

    # Conv + bias in one MXU pass.
    conv = jnp.dot(patches_ref[...], wb_ref[...],
                   precision=jax.lax.Precision.HIGHEST,
                   preferred_element_type=jnp.float32)      # (24, 42)
    act = jnp.tanh(conv)                                     # single dense tanh

    # Linear bias, accumulated with the pooled * weight terms.
    res = jnp.zeros((1, 42), jnp.float32) + lin_ref[0, 6]

    # 2x2 max-pool (rows are pre-grouped 4-per-cell) fused with Linear(6, 1).
    for k in range(6):
        m = jnp.max(act[4 * k:4 * k + 4, :], axis=0, keepdims=True)   # (1, 42)
        res = res + m * lin_ref[0, k]

    # Exact sigmoid.
    out_ref[...] = 1.0 / (1.0 + jnp.exp(-res))


def prepare_params(wconv, bconv, wlin, blin):
    """One-time (static) parameter packing; hoisted out of the per-call path.

    wconv: (42, 1, 4, 4), bconv: (42,), wlin: (1, 6), blin: (1,)
    Returns:
      wb : (17, 42) f32 -- conv weights (tap-major) with bias as the last row.
      lin: (1, 8)   f32 -- [wlin[0..5], blin, 0].
    """
    wconv_t = jnp.transpose(wconv[:, 0], (1, 2, 0)).reshape(16, 42).astype(jnp.float32)
    wb = jnp.concatenate([wconv_t, bconv.reshape(1, 42).astype(jnp.float32)], axis=0)
    lin = jnp.concatenate([wlin.reshape(6).astype(jnp.float32),
                           blin.reshape(1).astype(jnp.float32),
                           jnp.zeros((1,), jnp.float32)]).reshape(1, 8)
    return wb, lin


def connect4_forward(x, wb, lin):
    """x: (1, 6, 7) f32; wb/lin from prepare_params. Returns (42, 1) f32."""
    # Per-call work: a single tiny gather builds the augmented im2col matrix.
    flat = jnp.concatenate([x.reshape(42).astype(jnp.float32), _AUG])   # (44,)
    patches = flat[_PATCH_IDX]                                           # (24, 17)

    out = pl.pallas_call(
        connect4_kernel,
        out_shape=jax.ShapeDtypeStruct((1, 42), jnp.float32),
        in_specs=[
            pl.BlockSpec(memory_space=pltpu.MemorySpace.VMEM),   # patches
            pl.BlockSpec(memory_space=pltpu.MemorySpace.VMEM),   # conv weights + bias
            pl.BlockSpec(memory_space=pltpu.MemorySpace.SMEM),   # linear weights + bias
        ],
        out_specs=pl.BlockSpec(memory_space=pltpu.MemorySpace.VMEM),
    )(patches, wb, lin)

    return out.reshape(42, 1)


def reference_forward(x, wconv, bconv, wlin, blin):
    """Pure-JAX reference with identical math (PyTorch Connect4Bot semantics)."""
    xp = jnp.pad(x[0], ((1, 1), (1, 1)))
    conv = jnp.zeros((42, 5, 6), jnp.float32)
    for di in range(4):
        for dj in range(4):
            conv = conv + wconv[:, 0, di, dj][:, None, None] * xp[di:di + 5, dj:dj + 6][None]
    conv = jnp.tanh(conv + bconv[:, None, None])
    pooled = conv[:, :4, :6].reshape(42, 2, 2, 3, 2).max(axis=(2, 4))   # (42, 2, 3)
    flat = pooled.reshape(42, 6)
    lin = flat @ wlin.T + blin[None, :]                                  # (42, 1)
    return jax.nn.sigmoid(lin)


if __name__ == "__main__":
    key = jax.random.PRNGKey(0)
    k_x, k_wc, k_bc, k_wl, k_bl = jax.random.split(key, 5)

    # Unbatched NCHW-style input (C=1, H=6, W=7) -- Connect 4 board.
    x = jax.random.normal(k_x, (1, 6, 7), dtype=jnp.float32)

    # Deterministic synthetic parameters (PyTorch shapes).
    wconv = 0.1 * jax.random.normal(k_wc, (42, 1, 4, 4), dtype=jnp.float32)
    bconv = 0.1 * jax.random.normal(k_bc, (42,), dtype=jnp.float32)
    wlin = 0.1 * jax.random.normal(k_wl, (1, 6), dtype=jnp.float32)
    blin = 0.1 * jax.random.normal(k_bl, (1,), dtype=jnp.float32)

    # Static parameter packing happens once; per-call path is jitted.
    wb, lin = prepare_params(wconv, bconv, wlin, blin)
    fwd = jax.jit(connect4_forward)

    out = jax.block_until_ready(fwd(x, wb, lin))

    ref = reference_forward(x, wconv, bconv, wlin, blin)
    assert out.shape == (42, 1)
    assert jnp.allclose(out, ref, atol=1e-5, rtol=1e-4), (out, ref)

    print("KERNEL_OK")
</pallas_src>

<mosaic_0001>
module attributes {stable_mosaic.version = 11 : i64} {
  func.func @connect4_kernel(%arg0: memref<24x17xf32, #tpu.memory_space<vmem>>, %arg1: memref<17x42xf32, #tpu.memory_space<vmem>>, %arg2: memref<1x8xf32, #tpu.memory_space<smem>>, %arg3: memref<1x42xf32, #tpu.memory_space<vmem>>) attributes {dimension_semantics = [], scalar_prefetch = 0 : i64, scratch_operands = 0 : i64, tpu.core_type = #tpu.core_type<tc>} {
    %c0 = arith.constant 0 : index
    %c0_0 = arith.constant 0 : index
    %0 = vector.load %arg0[%c0, %c0_0] : memref<24x17xf32, #tpu.memory_space<vmem>>, vector<24x17xf32>
    %c0_1 = arith.constant 0 : index
    %c0_2 = arith.constant 0 : index
    %1 = vector.load %arg1[%c0_1, %c0_2] : memref<17x42xf32, #tpu.memory_space<vmem>>, vector<17x42xf32>
    %cst = arith.constant dense<0.000000e+00> : vector<24x42xf32>
    %2 = tpu.matmul %0, %1, %cst {dimension_numbers = #tpu.dot_dimension_numbers<[1], [0], [0], [1], [0, 0, 1, 1], [], []>, precision = #tpu.contract_precision<fp32>} : vector<24x17xf32>, vector<17x42xf32>, vector<24x42xf32> -> vector<24x42xf32>
    %3 = math.tanh %2 : vector<24x42xf32>
    %cst_3 = arith.constant 0.000000e+00 : f32
    %4 = vector.broadcast %cst_3 : f32 to vector<1x42xf32>
    %c0_4 = arith.constant 0 : index
    %c6 = arith.constant 6 : index
    %5 = memref.load %arg2[%c0_4, %c6] : memref<1x8xf32, #tpu.memory_space<smem>>
    %6 = vector.broadcast %5 : f32 to vector<1x42xf32>
    %7 = arith.addf %4, %6 : vector<1x42xf32>
    %8 = vector.extract_strided_slice %3 {offsets = [0, 0], sizes = [4, 42], strides = [1, 1]} : vector<24x42xf32> to vector<4x42xf32>
    %cst_5 = arith.constant dense<0xFF800000> : vector<42xf32>
    %9 = vector.multi_reduction <maximumf>, %8, %cst_5 [0] : vector<4x42xf32> to vector<42xf32>
    %10 = vector.shape_cast %9 : vector<42xf32> to vector<1x42xf32>
    %c0_6 = arith.constant 0 : index
    %c0_7 = arith.constant 0 : index
    %11 = memref.load %arg2[%c0_6, %c0_7] : memref<1x8xf32, #tpu.memory_space<smem>>
    %12 = vector.broadcast %11 : f32 to vector<1x42xf32>
    %13 = arith.mulf %10, %12 : vector<1x42xf32>
    %14 = arith.addf %7, %13 : vector<1x42xf32>
    %15 = vector.extract_strided_slice %3 {offsets = [4, 0], sizes = [4, 42], strides = [1, 1]} : vector<24x42xf32> to vector<4x42xf32>
    %cst_8 = arith.constant dense<0xFF800000> : vector<42xf32>
    %16 = vector.multi_reduction <maximumf>, %15, %cst_8 [0] : vector<4x42xf32> to vector<42xf32>
    %17 = vector.shape_cast %16 : vector<42xf32> to vector<1x42xf32>
    %c0_9 = arith.constant 0 : index
    %c1 = arith.constant 1 : index
    %18 = memref.load %arg2[%c0_9, %c1] : memref<1x8xf32, #tpu.memory_space<smem>>
    %19 = vector.broadcast %18 : f32 to vector<1x42xf32>
    %20 = arith.mulf %17, %19 : vector<1x42xf32>
    %21 = arith.addf %14, %20 : vector<1x42xf32>
    %22 = vector.extract_strided_slice %3 {offsets = [8, 0], sizes = [4, 42], strides = [1, 1]} : vector<24x42xf32> to vector<4x42xf32>
    %cst_10 = arith.constant dense<0xFF800000> : vector<42xf32>
    %23 = vector.multi_reduction <maximumf>, %22, %cst_10 [0] : vector<4x42xf32> to vector<42xf32>
    %24 = vector.shape_cast %23 : vector<42xf32> to vector<1x42xf32>
    %c0_11 = arith.constant 0 : index
    %c2 = arith.constant 2 : index
    %25 = memref.load %arg2[%c0_11, %c2] : memref<1x8xf32, #tpu.memory_space<smem>>
    %26 = vector.broadcast %25 : f32 to vector<1x42xf32>
    %27 = arith.mulf %24, %26 : vector<1x42xf32>
    %28 = arith.addf %21, %27 : vector<1x42xf32>
    %29 = vector.extract_strided_slice %3 {offsets = [12, 0], sizes = [4, 42], strides = [1, 1]} : vector<24x42xf32> to vector<4x42xf32>
    %cst_12 = arith.constant dense<0xFF800000> : vector<42xf32>
    %30 = vector.multi_reduction <maximumf>, %29, %cst_12 [0] : vector<4x42xf32> to vector<42xf32>
    %31 = vector.shape_cast %30 : vector<42xf32> to vector<1x42xf32>
    %c0_13 = arith.constant 0 : index
    %c3 = arith.constant 3 : index
    %32 = memref.load %arg2[%c0_13, %c3] : memref<1x8xf32, #tpu.memory_space<smem>>
    %33 = vector.broadcast %32 : f32 to vector<1x42xf32>
    %34 = arith.mulf %31, %33 : vector<1x42xf32>
    %35 = arith.addf %28, %34 : vector<1x42xf32>
    %36 = vector.extract_strided_slice %3 {offsets = [16, 0], sizes = [4, 42], strides = [1, 1]} : vector<24x42xf32> to vector<4x42xf32>
    %cst_14 = arith.constant dense<0xFF800000> : vector<42xf32>
    %37 = vector.multi_reduction <maximumf>, %36, %cst_14 [0] : vector<4x42xf32> to vector<42xf32>
    %38 = vector.shape_cast %37 : vector<42xf32> to vector<1x42xf32>
    %c0_15 = arith.constant 0 : index
    %c4 = arith.constant 4 : index
    %39 = memref.load %arg2[%c0_15, %c4] : memref<1x8xf32, #tpu.memory_space<smem>>
    %40 = vector.broadcast %39 : f32 to vector<1x42xf32>
    %41 = arith.mulf %38, %40 : vector<1x42xf32>
    %42 = arith.addf %35, %41 : vector<1x42xf32>
    %43 = vector.extract_strided_slice %3 {offsets = [20, 0], sizes = [4, 42], strides = [1, 1]} : vector<24x42xf32> to vector<4x42xf32>
    %cst_16 = arith.constant dense<0xFF800000> : vector<42xf32>
    %44 = vector.multi_reduction <maximumf>, %43, %cst_16 [0] : vector<4x42xf32> to vector<42xf32>
    %45 = vector.shape_cast %44 : vector<42xf32> to vector<1x42xf32>
    %c0_17 = arith.constant 0 : index
    %c5 = arith.constant 5 : index
    %46 = memref.load %arg2[%c0_17, %c5] : memref<1x8xf32, #tpu.memory_space<smem>>
    %47 = vector.broadcast %46 : f32 to vector<1x42xf32>
    %48 = arith.mulf %45, %47 : vector<1x42xf32>
    %49 = arith.addf %42, %48 : vector<1x42xf32>
    %cst_18 = arith.constant 0.000000e+00 : f32
    %50 = vector.broadcast %cst_18 : f32 to vector<1x42xf32>
    %51 = arith.subf %50, %49 : vector<1x42xf32>
    %52 = math.exp %51 : vector<1x42xf32>
    %cst_19 = arith.constant 1.000000e+00 : f32
    %53 = vector.broadcast %cst_19 : f32 to vector<1x42xf32>
    %54 = arith.addf %53, %52 : vector<1x42xf32>
    %cst_20 = arith.constant 1.000000e+00 : f32
    %55 = vector.broadcast %cst_20 : f32 to vector<1x42xf32>
    %56 = arith.divf %55, %54 : vector<1x42xf32>
    %c0_21 = arith.constant 0 : index
    %c0_22 = arith.constant 0 : index
    %57 = vector.load %arg3[%c0_21, %c0_22] : memref<1x42xf32, #tpu.memory_space<vmem>>, vector<1x42xf32>
    tpu.vector_store %arg3[%c0_21, %c0_22], %56 {strides = array<i32>} : memref<1x42xf32, #tpu.memory_space<vmem>>, vector<1x42xf32>,
    return
  }
}

</mosaic_0001>

<llo_original>
// kernel: connect4_forward.1
$region0: #{connect4_forward.1}
  #allocation0 [shape = 'u32[]', space=smem, size = 0x4, offset = 0x4, fixed_abs, tag = 'smem constant byte address 0x4 - core index']
  #allocation1 [shape = 'u32[144,128]{1,0:T(1,128)}', space=vmem, size = 0x12000, scoped, tag = 'internal scratch']
  %s0 = inlined_call_operand.vmem [shape: f32[24,17], index: 0, kind: input, shape index: {}]
  %s1 = inlined_call_operand.vmem [shape: f32[17,42], index: 1, kind: input, shape index: {}]
  %s2 = inlined_call_operand.vmem [shape: f32[1,8], index: 2, kind: input, shape index: {}]
  %s3 = inlined_call_operand.hbm [shape: f32[1,42], index: 3, kind: output, shape index: {}]
  %s4 = sld [smem:[#allocation0]]
  $region26: #{connect4_forward.1} parent=0
    _
  %s6 = ssub.s32 1, %s4
  %s7 = scalar_select 0, %s6, %s4
  $region1: #{connect4_forward.1} parent=0
    #allocation2 [shape = 'u8[512]{0}', space=smem, size = 0x200, scoped, tag = 'input window, operand 2, single buffered']
    #allocation3 [shape = 's32[1]{0}', space=sflag, size = 0x4, scoped, tag = 'scoped memory for connect4_forward.1']
    #allocation4 [shape = 's32[1]{0}', space=sflag, size = 0x4, scoped, tag = 'scoped memory for connect4_forward.1']
    #allocation5 [shape = 'u8[512]{0}', space=vmem, size = 0x400, scoped, tag = 'output window, operand 0, single buffered']
    %8 = vsyncpa [#allocation4], 0
    %9 = vsyncpa [#allocation3], 0
    // Predicated region
    $region2: #{connect4_forward.1} parent=1 // pred_check
      _
    $region3: #{connect4_forward.1} parent=1 // pred_check_branch
      %11 = sbr.rel (0) target = $region5
    $region4: #{connect4_forward.1} parent=1 // pred_region
      _
    $region5: #{connect4_forward.1} parent=1 // pred_fallthru
      _
    // Predicated region
    $region6: #{connect4_forward.1} parent=1 // pred_check
      _
    $region7: #{connect4_forward.1} parent=1 // pred_check_branch
      %13 = sbr.rel (0) target = $region9
    $region8: #{connect4_forward.1} parent=1 // pred_region
      _
    $region9: #{connect4_forward.1} parent=1 // pred_fallthru
      _
    // Predicated region
    $region10: #{connect4_forward.1} parent=1 // pred_check
      _
    $region11: #{connect4_forward.1} parent=1 // pred_check_branch
      %15 = sbr.rel (0) target = $region13
    $region12: #{connect4_forward.1} parent=1 // pred_region
      %s17 = ssub.s32 16, 16
      %18 = vsyncadd [#allocation4], %s17
      %s20 = sshll.u32 %s2, 4
      %s21 = int_to_ptr.vmem [resolvable:$true] %s20
      %23 = dma.vmem_to_smem %s21, 16, [#allocation2], [#allocation4]
    $region13: #{connect4_forward.1} parent=1 // pred_fallthru
      _
    // Predicated region
    $region14: #{connect4_forward.1} parent=1 // pred_check
      _
    $region15: #{connect4_forward.1} parent=1 // pred_check_branch
      %25 = sbr.rel (0) target = $region17
    $region16: #{connect4_forward.1} parent=1 // pred_region
      %26 = dma.done [#allocation4], 16
    $region17: #{connect4_forward.1} parent=1 // pred_fallthru
      _
    %27 = sfence
    %v28 = vld [vmem:[%s0] sm:$0xff]
    %v29 = vld [vmem:[%s0 + $0x8] sm:$0xff]
    %v30 = vld [vmem:[%s0 + $0x10] sm:$0xff]
    %v31 = vld [vmem:[%s1] sm:$0xff]
    %v32 = vld [vmem:[%s1 + $0x8] sm:$0xff]
    %v33 = vld [vmem:[%s1 + $0x10] sm:$0x1]
    %vm34 = vcmask 138240
    %v36 = vsel %vm34, %v28, 0
    %v39 = vsel %vm34, %v29, 0
    %v42 = vsel %vm34, %v30, 0
    %vm44 = vcmask 1040384
    %v46 = vsel %vm44, %v33, 0
    %48 = vmatprep.subr.mxu0 0.0
    %v49 = vand.u32 %v31, 4294901760
    %50 = vmatpush1.msra.mxu0 %v49
    %51 = vmatprep.subr.mxu0 0.0
    %v52 = vand.u32 %v32, 4294901760
    %53 = vmatpush1.msra.mxu0 %v52
    %54 = vmatprep.subr.mxu0 0.0
    %v55 = vand.u32 %v46, 4294901760
    %56 = vmatpush1.msra.mxu0 %v55
    %57 = vmatprep.subr.mxu0 0.0
    %58 = vmatpush1.msra.mxu0 0.0
    %59 = vmatprep.subr.mxu0 0.0
    %60 = vmatpush1.msra.mxu0 0.0
    %61 = vmatprep.subr.mxu0 0.0
    %62 = vmatpush1.msra.mxu0 0.0
    %63 = vmatprep.subr.mxu0 0.0
    %64 = vmatpush1.msra.mxu0 0.0
    %65 = vmatprep.subr.mxu0 0.0
    %66 = vmatpush1.msra.mxu0 0.0
    %67 = vmatprep.subr.mxu0 0.0
    %68 = vmatpush1.msra.mxu0 0.0
    %69 = vmatprep.subr.mxu0 0.0
    %70 = vmatpush1.msra.mxu0 0.0
    %71 = vmatprep.subr.mxu0 0.0
    %72 = vmatpush1.msra.mxu0 0.0
    %73 = vmatprep.subr.mxu0 0.0
    %74 = vmatpush1.msra.mxu0 0.0
    %75 = vmatprep.subr.mxu0 0.0
    %76 = vmatpush1.msra.mxu0 0.0
    %77 = vmatprep.subr.mxu0 0.0
    %78 = vmatpush1.msra.mxu0 0.0
    %79 = vmatprep.subr.mxu0 0.0
    %80 = vmatpush1.msra.mxu0 0.0
    %81 = vmatprep.subr.mxu0 0.0
    %82 = vmatpush1.msra.mxu0 0.0
    %83 = vmatprep.subr.mxu0 0.0
    %84 = vmatpush1.msra.mxu0 0.0
    %85 = vmatprep.subr.mxu0 0.0
    %86 = vmatpush1.msra.mxu0 0.0
    %87 = vmatprep.subr.mxu0 0.0
    %88 = vmatpush1.msra.mxu0 0.0
    %89 = vmatprep.subr.mxu0 0.0
    %90 = vmatpush1.msra.mxu0 0.0
    %91 = vmatprep.subr.mxu0 0.0
    %92 = vmatpush1.msra.mxu0 0.0
    %93 = vmatprep.subr.mxu0 0.0
    %94 = vmatpush1.msra.mxu0 0.0
    %95 = vmatprep.subr.mxu0 0.0
    %96 = vmatpush1.msra.mxu0 0.0
    %97 = vmatprep.subr.mxu0 0.0
    %98 = vmatpush1.msra.mxu0 0.0
    %99 = vmatprep.subr.mxu0 0.0
    %100 = vmatpush1.msra.mxu0 0.0
    %101 = vmatprep.subr.mxu0 0.0
    %102 = vmatpush1.msra.mxu0 0.0
    %103 = vmatprep.subr.mxu0 0.0
    %104 = vmatpush1.msra.mxu0 0.0
    %105 = vmatprep.subr.mxu0 0.0
    %106 = vmatpush1.msra.mxu0 0.0
    %107 = vmatprep.subr.mxu0 0.0
    %108 = vmatpush1.msra.mxu0 0.0
    %109 = vmatprep.subr.mxu0 0.0
    %110 = vmatpush1.msra.mxu0 0.0
    %111 = vmatprep.subr.mxu0 0.0
    %112 = vmatpush1.msra.mxu0 0.0
    %113 = vmatprep.subr.mxu0 0.0
    %114 = vmatpush1.msra.mxu0 0.0
    %115 = vmatprep.mubr.f32.mxu0 0.0
    %v116 = vand.u32 %v36, 4294901760
    %v117 = vsub.f32 %v36, %v116
    %v118 = vand.u32 %v117, 4294901760
    %v119 = vsub.f32 %v117, %v118
    %v120 = vand.u32 %v119, 4294901760
    %121 = vmatmul.mubr.f32.gmra.mrb[0].mxu0 %v120
    %v122 = vpop.f32.mrb[0].mxu0
    %v123 = vadd.f32 0.0, %v122
    %v124 = vpop.f32.mrb[0].mxu0
    %125 = vmatprep.mubr.f32.mxu0 0.0
    %v126 = vand.u32 %v39, 4294901760
    %v127 = vsub.f32 %v39, %v126
    %v128 = vand.u32 %v127, 4294901760
    %v129 = vsub.f32 %v127, %v128
    %v130 = vand.u32 %v129, 4294901760
    %131 = vmatmul.mubr.f32.gmra.mrb[0].mxu0 %v130
    %v132 = vpop.f32.mrb[0].mxu0
    %v133 = vadd.f32 0.0, %v132
    %v134 = vpop.f32.mrb[0].mxu0
    %135 = vmatprep.mubr.f32.mxu0 0.0
    %v136 = vand.u32 %v42, 4294901760
    %v137 = vsub.f32 %v42, %v136
    %v138 = vand.u32 %v137, 4294901760
    %v139 = vsub.f32 %v137, %v138
    %v140 = vand.u32 %v139, 4294901760
    %141 = vmatmul.mubr.f32.gmra.mrb[0].mxu0 %v140
    %v142 = vpop.f32.mrb[0].mxu0
    %v143 = vadd.f32 0.0, %v142
    %v144 = vpop.f32.mrb[0].mxu0
    %145 = vdwg.mxu0
    %146 = vmatprep.subr.mxu0 0.0
    %v147 = vand.u32 %v31, 4294901760
    %v148 = vsub.f32 %v31, %v147
    %v149 = vand.u32 %v148, 4294901760
    %v150 = vsub.f32 %v148, %v149
    %v151 = vand.u32 %v150, 4294901760
    %152 = vmatpush1.msra.mxu0 %v151
    %153 = vmatprep.subr.mxu0 0.0
    %v154 = vand.u32 %v32, 4294901760
    %v155 = vsub.f32 %v32, %v154
    %v156 = vand.u32 %v155, 4294901760
    %v157 = vsub.f32 %v155, %v156
    %v158 = vand.u32 %v157, 4294901760
    %159 = vmatpush1.msra.mxu0 %v158
    %160 = vmatprep.subr.mxu0 0.0
    %v161 = vand.u32 %v46, 4294901760
    %v162 = vsub.f32 %v46, %v161
    %v163 = vand.u32 %v162, 4294901760
    %v164 = vsub.f32 %v162, %v163
    %v165 = vand.u32 %v164, 4294901760
    %166 = vmatpush1.msra.mxu0 %v165
    %167 = vmatprep.subr.mxu0 0.0
    %168 = vmatpush1.msra.mxu0 0.0
    %169 = vmatprep.subr.mxu0 0.0
    %170 = vmatpush1.msra.mxu0 0.0
    %171 = vmatprep.subr.mxu0 0.0
    %172 = vmatpush1.msra.mxu0 0.0
    %173 = vmatprep.subr.mxu0 0.0
    %174 = vmatpush1.msra.mxu0 0.0
    %175 = vmatprep.subr.mxu0 0.0
    %176 = vmatpush1.msra.mxu0 0.0
    %177 = vmatprep.subr.mxu0 0.0
    %178 = vmatpush1.msra.mxu0 0.0
    %179 = vmatprep.subr.mxu0 0.0
    %180 = vmatpush1.msra.mxu0 0.0
    %181 = vmatprep.subr.mxu0 0.0
    %182 = vmatpush1.msra.mxu0 0.0
    %183 = vmatprep.subr.mxu0 0.0
    %184 = vmatpush1.msra.mxu0 0.0
    %185 = vmatprep.subr.mxu0 0.0
    %186 = vmatpush1.msra.mxu0 0.0
    %187 = vmatprep.subr.mxu0 0.0
    %188 = vmatpush1.msra.mxu0 0.0
    %189 = vmatprep.subr.mxu0 0.0
    %190 = vmatpush1.msra.mxu0 0.0
    %191 = vmatprep.subr.mxu0 0.0
    %192 = vmatpush1.msra.mxu0 0.0
    %193 = vmatprep.subr.mxu0 0.0
    %194 = vmatpush1.msra.mxu0 0.0
    %195 = vmatprep.subr.mxu0 0.0
    %196 = vmatpush1.msra.mxu0 0.0
    %197 = vmatprep.subr.mxu0 0.0
    %198 = vmatpush1.msra.mxu0 0.0
    %199 = vmatprep.subr.mxu0 0.0
    %200 = vmatpush1.msra.mxu0 0.0
    %201 = vmatprep.subr.mxu0 0.0
    %202 = vmatpush1.msra.mxu0 0.0
    %203 = vmatprep.subr.mxu0 0.0
    %204 = vmatpush1.msra.mxu0 0.0
    %205 = vmatprep.subr.mxu0 0.0
    %206 = vmatpush1.msra.mxu0 0.0
    %207 = vmatprep.subr.mxu0 0.0
    %208 = vmatpush1.msra.mxu0 0.0
    %209 = vmatprep.subr.mxu0 0.0
    %210 = vmatpush1.msra.mxu0 0.0
    %211 = vmatprep.subr.mxu0 0.0
    %212 = vmatpush1.msra.mxu0 0.0
    %213 = vmatprep.subr.mxu0 0.0
    %214 = vmatpush1.msra.mxu0 0.0
    %215 = vmatprep.subr.mxu0 0.0
    %216 = vmatpush1.msra.mxu0 0.0
    %217 = vmatprep.subr.mxu0 0.0
    %218 = vmatpush1.msra.mxu0 0.0
    %219 = vmatprep.subr.mxu0 0.0
    %220 = vmatpush1.msra.mxu0 0.0
    %221 = vmatprep.subr.mxu0 0.0
    %222 = vmatpush1.msra.mxu0 0.0
    %223 = vmatprep.subr.mxu0 0.0
    %224 = vmatpush1.msra.mxu0 0.0
    %225 = vmatprep.mubr.f32.mxu0 0.0
    %v226 = vand.u32 %v36, 4294901760
    %227 = vmatmul.mubr.f32.gmra.mrb[0].mxu0 %v226
    %v228 = vpop.f32.mrb[0].mxu0
    %v229 = vadd.f32 %v123, %v228
    %v230 = vpop.f32.mrb[0].mxu0
    %231 = vmatprep.mubr.f32.mxu0 0.0
    %v232 = vand.u32 %v39, 4294901760
    %233 = vmatmul.mubr.f32.gmra.mrb[0].mxu0 %v232
    %v234 = vpop.f32.mrb[0].mxu0
    %v235 = vadd.f32 %v133, %v234
    %v236 = vpop.f32.mrb[0].mxu0
    %237 = vmatprep.mubr.f32.mxu0 0.0
    %v238 = vand.u32 %v42, 4294901760
    %239 = vmatmul.mubr.f32.gmra.mrb[0].mxu0 %v238
    %v240 = vpop.f32.mrb[0].mxu0
    %v241 = vadd.f32 %v143, %v240
    %v242 = vpop.f32.mrb[0].mxu0
    %243 = vdwg.mxu0
    %244 = vmatprep.subr.mxu0 0.0
    %v245 = vand.u32 %v31, 4294901760
    %v246 = vsub.f32 %v31, %v245
    %247 = vmatpush1.msra.mxu0 %v246
    %248 = vmatprep.subr.mxu0 0.0
    %v249 = vand.u32 %v32, 4294901760
    %v250 = vsub.f32 %v32, %v249
    %251 = vmatpush1.msra.mxu0 %v250
    %252 = vmatprep.subr.mxu0 0.0
    %v253 = vand.u32 %v46, 4294901760
    %v254 = vsub.f32 %v46, %v253
    %255 = vmatpush1.msra.mxu0 %v254
    %256 = vmatprep.subr.mxu0 0.0
    %257 = vmatpush1.msra.mxu0 0.0
    %258 = vmatprep.subr.mxu0 0.0
    %259 = vmatpush1.msra.mxu0 0.0
    %260 = vmatprep.subr.mxu0 0.0
    %261 = vmatpush1.msra.mxu0 0.0
    %262 = vmatprep.subr.mxu0 0.0
    %263 = vmatpush1.msra.mxu0 0.0
    %264 = vmatprep.subr.mxu0 0.0
    %265 = vmatpush1.msra.mxu0 0.0
    %266 = vmatprep.subr.mxu0 0.0
    %267 = vmatpush1.msra.mxu0 0.0
    %268 = vmatprep.subr.mxu0 0.0
    %269 = vmatpush1.msra.mxu0 0.0
    %270 = vmatprep.subr.mxu0 0.0
    %271 = vmatpush1.msra.mxu0 0.0
    %272 = vmatprep.subr.mxu0 0.0
    %273 = vmatpush1.msra.mxu0 0.0
    %274 = vmatprep.subr.mxu0 0.0
    %275 = vmatpush1.msra.mxu0 0.0
    %276 = vmatprep.subr.mxu0 0.0
    %277 = vmatpush1.msra.mxu0 0.0
    %278 = vmatprep.subr.mxu0 0.0
    %279 = vmatpush1.msra.mxu0 0.0
    %280 = vmatprep.subr.mxu0 0.0
    %281 = vmatpush1.msra.mxu0 0.0
    %282 = vmatprep.subr.mxu0 0.0
    %283 = vmatpush1.msra.mxu0 0.0
    %284 = vmatprep.subr.mxu0 0.0
    %285 = vmatpush1.msra.mxu0 0.0
    %286 = vmatprep.subr.mxu0 0.0
    %287 = vmatpush1.msra.mxu0 0.0
    %288 = vmatprep.subr.mxu0 0.0
    %289 = vmatpush1.msra.mxu0 0.0
    %290 = vmatprep.subr.mxu0 0.0
    %291 = vmatpush1.msra.mxu0 0.0
    %292 = vmatprep.subr.mxu0 0.0
    %293 = vmatpush1.msra.mxu0 0.0
    %294 = vmatprep.subr.mxu0 0.0
    %295 = vmatpush1.msra.mxu0 0.0
    %296 = vmatprep.subr.mxu0 0.0
    %297 = vmatpush1.msra.mxu0 0.0
    %298 = vmatprep.subr.mxu0 0.0
    %299 = vmatpush1.msra.mxu0 0.0
    %300 = vmatprep.subr.mxu0 0.0
    %301 = vmatpush1.msra.mxu0 0.0
    %302 = vmatprep.subr.mxu0 0.0
    %303 = vmatpush1.msra.mxu0 0.0
    %304 = vmatprep.subr.mxu0 0.0
    %305 = vmatpush1.msra.mxu0 0.0
    %306 = vmatprep.subr.mxu0 0.0
    %307 = vmatpush1.msra.mxu0 0.0
    %308 = vmatprep.subr.mxu0 0.0
    %309 = vmatpush1.msra.mxu0 0.0
    %310 = vmatprep.subr.mxu0 0.0
    %311 = vmatpush1.msra.mxu0 0.0
    %312 = vmatprep.subr.mxu0 0.0
    %313 = vmatpush1.msra.mxu0 0.0
    %314 = vmatprep.mubr.f32.mxu0 0.0
    %v315 = vand.u32 %v36, 4294901760
    %v316 = vsub.f32 %v36, %v315
    %317 = vmatmul.mubr.f32.gmra.mrb[0].mxu0 %v316
    %v318 = vpop.f32.mrb[0].mxu0
    %v319 = vadd.f32 %v229, %v318
    %v320 = vpop.f32.mrb[0].mxu0
    %321 = vmatprep.mubr.f32.mxu0 0.0
    %v322 = vand.u32 %v39, 4294901760
    %v323 = vsub.f32 %v39, %v322
    %324 = vmatmul.mubr.f32.gmra.mrb[0].mxu0 %v323
    %v325 = vpop.f32.mrb[0].mxu0
    %v326 = vadd.f32 %v235, %v325
    %v327 = vpop.f32.mrb[0].mxu0
    %328 = vmatprep.mubr.f32.mxu0 0.0
    %v329 = vand.u32 %v42, 4294901760
    %v330 = vsub.f32 %v42, %v329
    %331 = vmatmul.mubr.f32.gmra.mrb[0].mxu0 %v330
    %v332 = vpop.f32.mrb[0].mxu0
    %v333 = vadd.f32 %v241, %v332
    %v334 = vpop.f32.mrb[0].mxu0
    %335 = vdwg.mxu0
    %336 = vmatprep.subr.mxu0 0.0
    %v337 = vand.u32 %v31, 4294901760
    %338 = vmatpush1.msra.mxu0 %v337
    %339 = vmatprep.subr.mxu0 0.0
    %v340 = vand.u32 %v32, 4294901760
    %341 = vmatpush1.msra.mxu0 %v340
    %342 = vmatprep.subr.mxu0 0.0
    %v343 = vand.u32 %v46, 4294901760
    %344 = vmatpush1.msra.mxu0 %v343
    %345 = vmatprep.subr.mxu0 0.0
    %346 = vmatpush1.msra.mxu0 0.0
    %347 = vmatprep.subr.mxu0 0.0
    %348 = vmatpush1.msra.mxu0 0.0
    %349 = vmatprep.subr.mxu0 0.0
    %350 = vmatpush1.msra.mxu0 0.0
    %351 = vmatprep.subr.mxu0 0.0
    %352 = vmatpush1.msra.mxu0 0.0
    %353 = vmatprep.subr.mxu0 0.0
    %354 = vmatpush1.msra.mxu0 0.0
    %355 = vmatprep.subr.mxu0 0.0
    %356 = vmatpush1.msra.mxu0 0.0
    %357 = vmatprep.subr.mxu0 0.0
    %358 = vmatpush1.msra.mxu0 0.0
    %359 = vmatprep.subr.mxu0 0.0
    %360 = vmatpush1.msra.mxu0 0.0
    %361 = vmatprep.subr.mxu0 0.0
    %362 = vmatpush1.msra.mxu0 0.0
    %363 = vmatprep.subr.mxu0 0.0
    %364 = vmatpush1.msra.mxu0 0.0
    %365 = vmatprep.subr.mxu0 0.0
    %366 = vmatpush1.msra.mxu0 0.0
    %367 = vmatprep.subr.mxu0 0.0
    %368 = vmatpush1.msra.mxu0 0.0
    %369 = vmatprep.subr.mxu0 0.0
    %370 = vmatpush1.msra.mxu0 0.0
    %371 = vmatprep.subr.mxu0 0.0
    %372 = vmatpush1.msra.mxu0 0.0
    %373 = vmatprep.subr.mxu0 0.0
    %374 = vmatpush1.msra.mxu0 0.0
    %375 = vmatprep.subr.mxu0 0.0
    %376 = vmatpush1.msra.mxu0 0.0
    %377 = vmatprep.subr.mxu0 0.0
    %378 = vmatpush1.msra.mxu0 0.0
    %379 = vmatprep.subr.mxu0 0.0
    %380 = vmatpush1.msra.mxu0 0.0
    %381 = vmatprep.subr.mxu0 0.0
    %382 = vmatpush1.msra.mxu0 0.0
    %383 = vmatprep.subr.mxu0 0.0
    %384 = vmatpush1.msra.mxu0 0.0
    %385 = vmatprep.subr.mxu0 0.0
    %386 = vmatpush1.msra.mxu0 0.0
    %387 = vmatprep.subr.mxu0 0.0
    %388 = vmatpush1.msra.mxu0 0.0
    %389 = vmatprep.subr.mxu0 0.0
    %390 = vmatpush1.msra.mxu0 0.0
    %391 = vmatprep.subr.mxu0 0.0
    %392 = vmatpush1.msra.mxu0 0.0
    %393 = vmatprep.subr.mxu0 0.0
    %394 = vmatpush1.msra.mxu0 0.0
    %395 = vmatprep.subr.mxu0 0.0
    %396 = vmatpush1.msra.mxu0 0.0
    %397 = vmatprep.subr.mxu0 0.0
    %398 = vmatpush1.msra.mxu0 0.0
    %399 = vmatprep.subr.mxu0 0.0
    %400 = vmatpush1.msra.mxu0 0.0
    %401 = vmatprep.subr.mxu0 0.0
    %402 = vmatpush1.msra.mxu0 0.0
    %403 = vmatprep.mubr.f32.mxu0 0.0
    %v404 = vand.u32 %v36, 4294901760
    %v405 = vsub.f32 %v36, %v404
    %v406 = vand.u32 %v405, 4294901760
    %407 = vmatmul.mubr.f32.gmra.mrb[0].mxu0 %v406
    %v408 = vpop.f32.mrb[0].mxu0
    %v409 = vadd.f32 %v319, %v408
    %v410 = vpop.f32.mrb[0].mxu0
    %411 = vmatprep.mubr.f32.mxu0 0.0
    %v412 = vand.u32 %v39, 4294901760
    %v413 = vsub.f32 %v39, %v412
    %v414 = vand.u32 %v413, 4294901760
    %415 = vmatmul.mubr.f32.gmra.mrb[0].mxu0 %v414
    %v416 = vpop.f32.mrb[0].mxu0
    %v417 = vadd.f32 %v326, %v416
    %v418 = vpop.f32.mrb[0].mxu0
    %419 = vmatprep.mubr.f32.mxu0 0.0
    %v420 = vand.u32 %v42, 4294901760
    %v421 = vsub.f32 %v42, %v420
    %v422 = vand.u32 %v421, 4294901760
    %423 = vmatmul.mubr.f32.gmra.mrb[0].mxu0 %v422
    %v424 = vpop.f32.mrb[0].mxu0
    %v425 = vadd.f32 %v333, %v424
    %v426 = vpop.f32.mrb[0].mxu0
    %427 = vdwg.mxu0
    %428 = vmatprep.subr.mxu0 0.0
    %v429 = vand.u32 %v31, 4294901760
    %v430 = vsub.f32 %v31, %v429
    %v431 = vand.u32 %v430, 4294901760
    %432 = vmatpush1.msra.mxu0 %v431
    %433 = vmatprep.subr.mxu0 0.0
    %v434 = vand.u32 %v32, 4294901760
    %v435 = vsub.f32 %v32, %v434
    %v436 = vand.u32 %v435, 4294901760
    %437 = vmatpush1.msra.mxu0 %v436
    %438 = vmatprep.subr.mxu0 0.0
    %v439 = vand.u32 %v46, 4294901760
    %v440 = vsub.f32 %v46, %v439
    %v441 = vand.u32 %v440, 4294901760
    %442 = vmatpush1.msra.mxu0 %v441
    %443 = vmatprep.subr.mxu0 0.0
    %444 = vmatpush1.msra.mxu0 0.0
    %445 = vmatprep.subr.mxu0 0.0
    %446 = vmatpush1.msra.mxu0 0.0
    %447 = vmatprep.subr.mxu0 0.0
    %448 = vmatpush1.msra.mxu0 0.0
    %449 = vmatprep.subr.mxu0 0.0
    %450 = vmatpush1.msra.mxu0 0.0
    %451 = vmatprep.subr.mxu0 0.0
    %452 = vmatpush1.msra.mxu0 0.0
    %453 = vmatprep.subr.mxu0 0.0
    %454 = vmatpush1.msra.mxu0 0.0
    %455 = vmatprep.subr.mxu0 0.0
    %456 = vmatpush1.msra.mxu0 0.0
    %457 = vmatprep.subr.mxu0 0.0
    %458 = vmatpush1.msra.mxu0 0.0
    %459 = vmatprep.subr.mxu0 0.0
    %460 = vmatpush1.msra.mxu0 0.0
    %461 = vmatprep.subr.mxu0 0.0
    %462 = vmatpush1.msra.mxu0 0.0
    %463 = vmatprep.subr.mxu0 0.0
    %464 = vmatpush1.msra.mxu0 0.0
    %465 = vmatprep.subr.mxu0 0.0
    %466 = vmatpush1.msra.mxu0 0.0
    %467 = vmatprep.subr.mxu0 0.0
    %468 = vmatpush1.msra.mxu0 0.0
    %469 = vmatprep.subr.mxu0 0.0
    %470 = vmatpush1.msra.mxu0 0.0
    %471 = vmatprep.subr.mxu0 0.0
    %472 = vmatpush1.msra.mxu0 0.0
    %473 = vmatprep.subr.mxu0 0.0
    %474 = vmatpush1.msra.mxu0 0.0
    %475 = vmatprep.subr.mxu0 0.0
    %476 = vmatpush1.msra.mxu0 0.0
    %477 = vmatprep.subr.mxu0 0.0
    %478 = vmatpush1.msra.mxu0 0.0
    %479 = vmatprep.subr.mxu0 0.0
    %480 = vmatpush1.msra.mxu0 0.0
    %481 = vmatprep.subr.mxu0 0.0
    %482 = vmatpush1.msra.mxu0 0.0
    %483 = vmatprep.subr.mxu0 0.0
    %484 = vmatpush1.msra.mxu0 0.0
    %485 = vmatprep.subr.mxu0 0.0
    %486 = vmatpush1.msra.mxu0 0.0
    %487 = vmatprep.subr.mxu0 0.0
    %488 = vmatpush1.msra.mxu0 0.0
    %489 = vmatprep.subr.mxu0 0.0
    %490 = vmatpush1.msra.mxu0 0.0
    %491 = vmatprep.subr.mxu0 0.0
    %492 = vmatpush1.msra.mxu0 0.0
    %493 = vmatprep.subr.mxu0 0.0
    %494 = vmatpush1.msra.mxu0 0.0
    %495 = vmatprep.subr.mxu0 0.0
    %496 = vmatpush1.msra.mxu0 0.0
    %497 = vmatprep.subr.mxu0 0.0
    %498 = vmatpush1.msra.mxu0 0.0
    %499 = vmatprep.subr.mxu0 0.0
    %500 = vmatpush1.msra.mxu0 0.0
    %501 = vmatprep.mubr.f32.mxu0 0.0
    %v502 = vand.u32 %v36, 4294901760
    %503 = vmatmul.mubr.f32.gmra.mrb[0].mxu0 %v502
    %v504 = vpop.f32.mrb[0].mxu0
    %v505 = vadd.f32 %v409, %v504
    %v506 = vpop.f32.mrb[0].mxu0
    %507 = vmatprep.mubr.f32.mxu0 0.0
    %v508 = vand.u32 %v39, 4294901760
    %509 = vmatmul.mubr.f32.gmra.mrb[0].mxu0 %v508
    %v510 = vpop.f32.mrb[0].mxu0
    %v511 = vadd.f32 %v417, %v510
    %v512 = vpop.f32.mrb[0].mxu0
    %513 = vmatprep.mubr.f32.mxu0 0.0
    %v514 = vand.u32 %v42, 4294901760
    %515 = vmatmul.mubr.f32.gmra.mrb[0].mxu0 %v514
    %v516 = vpop.f32.mrb[0].mxu0
    %v517 = vadd.f32 %v425, %v516
    %v518 = vpop.f32.mrb[0].mxu0
    %519 = vdwg.mxu0
    %520 = vmatprep.subr.mxu0 0.0
    %v521 = vand.u32 %v31, 4294901760
    %522 = vmatpush1.msra.mxu0 %v521
    %523 = vmatprep.subr.mxu0 0.0
    %v524 = vand.u32 %v32, 4294901760
    %525 = vmatpush1.msra.mxu0 %v524
    %526 = vmatprep.subr.mxu0 0.0
    %v527 = vand.u32 %v46, 4294901760
    %528 = vmatpush1.msra.mxu0 %v527
    %529 = vmatprep.subr.mxu0 0.0
    %530 = vmatpush1.msra.mxu0 0.0
    %531 = vmatprep.subr.mxu0 0.0
    %532 = vmatpush1.msra.mxu0 0.0
    %533 = vmatprep.subr.mxu0 0.0
    %534 = vmatpush1.msra.mxu0 0.0
    %535 = vmatprep.subr.mxu0 0.0
    %536 = vmatpush1.msra.mxu0 0.0
    %537 = vmatprep.subr.mxu0 0.0
    %538 = vmatpush1.msra.mxu0 0.0
    %539 = vmatprep.subr.mxu0 0.0
    %540 = vmatpush1.msra.mxu0 0.0
    %541 = vmatprep.subr.mxu0 0.0
    %542 = vmatpush1.msra.mxu0 0.0
    %543 = vmatprep.subr.mxu0 0.0
    %544 = vmatpush1.msra.mxu0 0.0
    %545 = vmatprep.subr.mxu0 0.0
    %546 = vmatpush1.msra.mxu0 0.0
    %547 = vmatprep.subr.mxu0 0.0
    %548 = vmatpush1.msra.mxu0 0.0
    %549 = vmatprep.subr.mxu0 0.0
    %550 = vmatpush1.msra.mxu0 0.0
    %551 = vmatprep.subr.mxu0 0.0
    %552 = vmatpush1.msra.mxu0 0.0
    %553 = vmatprep.subr.mxu0 0.0
    %554 = vmatpush1.msra.mxu0 0.0
    %555 = vmatprep.subr.mxu0 0.0
    %556 = vmatpush1.msra.mxu0 0.0
    %557 = vmatprep.subr.mxu0 0.0
    %558 = vmatpush1.msra.mxu0 0.0
    %559 = vmatprep.subr.mxu0 0.0
    %560 = vmatpush1.msra.mxu0 0.0
    %561 = vmatprep.subr.mxu0 0.0
    %562 = vmatpush1.msra.mxu0 0.0
    %563 = vmatprep.subr.mxu0 0.0
    %564 = vmatpush1.msra.mxu0 0.0
    %565 = vmatprep.subr.mxu0 0.0
    %566 = vmatpush1.msra.mxu0 0.0
    %567 = vmatprep.subr.mxu0 0.0
    %568 = vmatpush1.msra.mxu0 0.0
    %569 = vmatprep.subr.mxu0 0.0
    %570 = vmatpush1.msra.mxu0 0.0
    %571 = vmatprep.subr.mxu0 0.0
    %572 = vmatpush1.msra.mxu0 0.0
    %573 = vmatprep.subr.mxu0 0.0
    %574 = vmatpush1.msra.mxu0 0.0
    %575 = vmatprep.subr.mxu0 0.0
    %576 = vmatpush1.msra.mxu0 0.0
    %577 = vmatprep.subr.mxu0 0.0
    %578 = vmatpush1.msra.mxu0 0.0
    %579 = vmatprep.subr.mxu0 0.0
    %580 = vmatpush1.msra.mxu0 0.0
    %581 = vmatprep.subr.mxu0 0.0
    %582 = vmatpush1.msra.mxu0 0.0
    %583 = vmatprep.subr.mxu0 0.0
    %584 = vmatpush1.msra.mxu0 0.0
    %585 = vmatprep.subr.mxu0 0.0
    %586 = vmatpush1.msra.mxu0 0.0
    %587 = vmatprep.mubr.f32.mxu0 0.0
    %v588 = vand.u32 %v36, 4294901760
    %589 = vmatmul.mubr.f32.gmra.mrb[0].mxu0 %v588
    %v590 = vpop.f32.mrb[0].mxu0
    %v591 = vadd.f32 %v505, %v590
    %v592 = vpop.f32.mrb[0].mxu0
    %593 = vmatprep.mubr.f32.mxu0 0.0
    %v594 = vand.u32 %v39, 4294901760
    %595 = vmatmul.mubr.f32.gmra.mrb[0].mxu0 %v594
    %v596 = vpop.f32.mrb[0].mxu0
    %v597 = vadd.f32 %v511, %v596
    %v598 = vpop.f32.mrb[0].mxu0
    %599 = vmatprep.mubr.f32.mxu0 0.0
    %v600 = vand.u32 %v42, 4294901760
    %601 = vmatmul.mubr.f32.gmra.mrb[0].mxu0 %v600
    %v602 = vpop.f32.mrb[0].mxu0
    %v603 = vadd.f32 %v517, %v602
    %v604 = vpop.f32.mrb[0].mxu0
    %605 = vdwg.mxu0
    %v606 = vtanh.pop %v591
    %v607 = vtanh.pop %v597
    %v608 = vtanh.pop %v603
    %s609 = sld [smem:[#allocation2 + $0x6]]
    %v610 = vstv %s609
    %v611 = vadd.f32 %v610, 0.0
    %vm612 = vcmask 338944
    %v613 = vsel %vm612, %v606, -inf
    %v614 = vrot.slane %v613, 4
    %v615 = vmax.f32 %v613, %v614
    %v616 = vrot.slane %v615, 2
    %v617 = vmax.f32 %v615, %v616
    %v618 = vrot.slane %v617, 1
    %v619 = vmax.f32 %v617, %v618
    %s620 = sld [smem:[#allocation2]]
    %v621 = vstv %s620
    %v622 = vmul.f32 %v619, %v621
    %v623 = vadd.f32 %v611, %v622
    %vm624 = vcmask 343044
    %v625 = vsel %vm624, %v606, -inf
    %v626 = vrot.slane %v625, 4
    %v627 = vmax.f32 %v625, %v626
    %v628 = vrot.slane %v627, 2
    %v629 = vmax.f32 %v627, %v628
    %v630 = vrot.slane %v629, 1
    %v631 = vmax.f32 %v629, %v630
    %s632 = sld [smem:[#allocation2 + $0x1]]
    %v633 = vstv %s632
    %v634 = vmul.f32 %v631, %v633
    %v635 = vadd.f32 %v623, %v634
    %v636 = vsel %vm612, %v607, -inf
    %v637 = vrot.slane %v636, 4
    %v638 = vmax.f32 %v636, %v637
    %v639 = vrot.slane %v638, 2
    %v640 = vmax.f32 %v638, %v639
    %v641 = vrot.slane %v640, 1
    %v642 = vmax.f32 %v640, %v641
    %s643 = sld [smem:[#allocation2 + $0x2]]
    %v644 = vstv %s643
    %v645 = vmul.f32 %v642, %v644
    %v646 = vadd.f32 %v635, %v645
    %v647 = vsel %vm624, %v607, -inf
    %v648 = vrot.slane %v647, 4
    %v649 = vmax.f32 %v647, %v648
    %v650 = vrot.slane %v649, 2
    %v651 = vmax.f32 %v649, %v650
    %v652 = vrot.slane %v651, 1
    %v653 = vmax.f32 %v651, %v652
    %s654 = sld [smem:[#allocation2 + $0x3]]
    %v655 = vstv %s654
    %v656 = vmul.f32 %v653, %v655
    %v657 = vadd.f32 %v646, %v656
    %v658 = vsel %vm612, %v608, -inf
    %v659 = vrot.slane %v658, 4
    %v660 = vmax.f32 %v658, %v659
    %v661 = vrot.slane %v660, 2
    %v662 = vmax.f32 %v660, %v661
    %v663 = vrot.slane %v662, 1
    %v664 = vmax.f32 %v662, %v663
    %s665 = sld [smem:[#allocation2 + $0x4]]
    %v666 = vstv %s665
    %v667 = vmul.f32 %v664, %v666
    %v668 = vadd.f32 %v657, %v667
    %v669 = vsel %vm624, %v608, -inf
    %v670 = vrot.slane %v669, 4
    %v671 = vmax.f32 %v669, %v670
    %v672 = vrot.slane %v671, 2
    %v673 = vmax.f32 %v671, %v672
    %v674 = vrot.slane %v673, 1
    %v675 = vmax.f32 %v673, %v674
    %s676 = sld [smem:[#allocation2 + $0x5]]
    %v677 = vstv %s676
    %v678 = vmul.f32 %v675, %v677
    %v679 = vadd.f32 %v668, %v678
    %v680 = vsub.f32 0.0, %v679
    %v681 = vmul.f32 %v680, 1.442695
    %v682 = vpow.pop %v681
    %v683 = vadd.f32 %v682, 1.0
    %v684 = vrcp.pop %v683
    %v685 = vmul.f32 1.0, %v684
    %vm686 = vcmask 335872
    %687 = vst.msk [vmem:[#allocation5] sm:$0x1] %vm686, %v685
    // Predicated region
    $region18: #{connect4_forward.1} parent=1 // pred_check
      _
    $region19: #{connect4_forward.1} parent=1 // pred_check_branch
      %689 = sbr.rel (0) target = $region21
    $region20: #{connect4_forward.1} parent=1 // pred_region
      %s691 = ssub.s32 16, 16
      %692 = vsyncadd [#allocation3], %s691
      %s694 = sshll.u32 [#allocation5], 4
      %s695 = int_to_ptr.vmem [resolvable:$true] %s694
      %697 = dma.vmem_to_hbm [thread:$0]  %s695, 16, %s3, [#allocation3]
    $region21: #{connect4_forward.1} parent=1 // pred_fallthru
      _
    // Predicated region
    $region22: #{connect4_forward.1} parent=1 // pred_check
      _
    $region23: #{connect4_forward.1} parent=1 // pred_check_branch
      %699 = sbr.rel (0) target = $region25
    $region24: #{connect4_forward.1} parent=1 // pred_region
      %700 = dma.done [#allocation3], 16
    $region25: #{connect4_forward.1} parent=1 // pred_fallthru
      _
    %701 = vsyncpa [#allocation3], 1
    %702 = vsyncpa [#allocation4], 1

</llo_original>
